<compile_context>
chip_gen: v6e
topology: v6e:2x2x1
jax: 0.10.0
libtpu: 0.0.40
codegen_flags: <defaults>
</compile_context>

<pallas_src>
import jax
import jax.numpy as jnp
from jax.experimental import pallas as pl
from jax.experimental.pallas import tpu as pltpu

_ROW_LANES = 384        # lanes per row: 3 * 128 -> lane-aligned AND a whole number of
                        # (channel) groups per row, so groups never straddle rows.
_MAX_BLOCK_ROWS = 4096  # rows per block cap: 4096 * 384 * 4 B = 6 MiB per buffer.


def _cdiv(a, b):
    return -(-a // b)


def _round_up(a, b):
    return _cdiv(a, b) * b


def _nn11_kernel(params_ref, x_ref, o_ref):
    # params_ref : (10,) float32 in SMEM
    #   [0:3] conv weight (per input channel), [3] conv bias,
    #   [4:7] fc weight (per output feature),  [7:10] fc bias
    # x_ref / o_ref : (block_rows, 384) VMEM blocks of the flattened, channel-
    # interleaved tensor.  Lane l of any row holds channel c = l % 3 of some batch
    # element; each group of 3 consecutive lanes is one batch element.
    x = x_ref[...]
    _, cols = x.shape

    # Per-lane channel id and per-lane parameter patterns (built once per block,
    # (1, cols) only; broadcast along sublanes in the element-wise ops below).
    c = jax.lax.broadcasted_iota(jnp.int32, (1, cols), 1) % 3
    wc = jnp.where(c == 0, params_ref[0], jnp.where(c == 1, params_ref[1], params_ref[2]))
    wf = jnp.where(c == 0, params_ref[4], jnp.where(c == 1, params_ref[5], params_ref[6]))
    bf = jnp.where(c == 0, params_ref[7], jnp.where(c == 1, params_ref[8], params_ref[9]))
    bc = params_ref[3]

    # 1x1 conv: per-lane weighted value, then a 3-lane group sum.
    y = x * wc
    # Symmetric neighbor sum: s[l] = y[l-1] + y[l] + y[l+1] (per row).  Using both
    # +1 and -1 (= cols-1) rotations makes the result independent of the rotate
    # direction convention; at channel-1 (group-center) lanes s is the full group
    # sum.  Wrap-around lanes are either unused or masked to zero below.
    s = y + pltpu.roll(y, 1, axis=1) + pltpu.roll(y, cols - 1, axis=1)
    h = jnp.maximum(s + bc, 0.0)          # ReLU(conv) — valid at channel-1 lanes
    hc = jnp.where(c == 1, h, 0.0)        # keep only group centers
    # Broadcast the center value to all 3 lanes of its group (neighbors of a
    # center lane are the other two channels of the same batch element).
    hb = hc + pltpu.roll(hc, 1, axis=1) + pltpu.roll(hc, cols - 1, axis=1)

    # fc1: out lane (channel j) = fc_w[j, 0] * h + fc_b[j]; lane-dense store.
    o_ref[...] = hb * wf + bf


def neural_network_1_1(x_nchw, conv_w, conv_b, fc_w, fc_b, *, min_pallas_batch=4096):
    """Forward pass matching the PyTorch module.

    Args:
      x_nchw : (N, 3, 1, 1) float32
      conv_w : (1, 3, 1, 1) float32   (out_ch, in_ch, kH, kW)
      conv_b : (1,)         float32
      fc_w   : (3, 1)       float32   (out_features, in_features)
      fc_b   : (3,)         float32
      min_pallas_batch : below this N, compute with plain jnp (fast path).
    Returns:
      (N, 3) float32
    """
    n = x_nchw.shape[0]
    x2 = x_nchw.reshape(n, 3).astype(jnp.float32)          # zero-copy view
    cw = conv_w.reshape(3).astype(jnp.float32)
    cb = conv_b.reshape(1).astype(jnp.float32)
    fw = fc_w.reshape(3).astype(jnp.float32)                # fc_w[j, 0]
    fb = fc_b.reshape(3).astype(jnp.float32)

    # Small-N fast path: launch overhead would dominate; let XLA fuse it.
    if n < min_pallas_batch:
        h = jnp.maximum(x2[:, 0] * cw[0] + x2[:, 1] * cw[1] + x2[:, 2] * cw[2] + cb[0], 0.0)
        return h[:, None] * fw[None, :] + fb[None, :]

    # ---- Pallas path: flat, channel-interleaved, lane-dense layout ----
    elems = n * 3
    rows = _cdiv(elems, _ROW_LANES)
    grid = _cdiv(rows, _MAX_BLOCK_ROWS)
    if grid == 1 and rows >= 16:
        grid = 2                      # make sure v7x's two TensorCores both run
    elif grid > 1 and grid % 2 == 1:
        grid += 1                     # even grid -> balanced megacore split
    block_rows = _round_up(_cdiv(rows, grid), 8)
    rows_pad = grid * block_rows      # padding bounded by ~8 rows per grid step

    flat = x2.reshape(elems)                                # zero-copy
    pad = rows_pad * _ROW_LANES - elems
    if pad:
        # TODO(synk): the pad/slice copies could be removed entirely by emitting a
        # 384-aligned interleaved layout in the surrounding graph (or via
        # allow_input_fusion); they only trigger when 3*N % 384 != 0.
        flat = jnp.pad(flat, (0, pad))
    xg = flat.reshape(rows_pad, _ROW_LANES)

    # All 10 parameter scalars in one tiny SMEM array (one transfer).
    params = jnp.concatenate([cw, cb, fw, fb])              # (10,)

    block_bytes = block_rows * _ROW_LANES * 4
    vmem_limit = int(min(48 << 20, max(16 << 20, 4 * block_bytes + (4 << 20))))

    # ~10 VPU ops / element, 8 B / element HBM traffic (+40 B params).
    cost = pl.CostEstimate(
        flops=10 * rows_pad * _ROW_LANES,
        transcendentals=0,
        bytes_accessed=2 * rows_pad * _ROW_LANES * 4 + 10 * 4,
    )

    out2d = pl.pallas_call(
        _nn11_kernel,
        out_shape=jax.ShapeDtypeStruct((rows_pad, _ROW_LANES), jnp.float32),
        grid=(grid,),
        in_specs=[
            pl.BlockSpec(memory_space=pltpu.SMEM),                    # params (whole array)
            pl.BlockSpec((block_rows, _ROW_LANES), lambda i: (i, 0)),  # x block
        ],
        out_specs=pl.BlockSpec((block_rows, _ROW_LANES), lambda i: (i, 0)),
        compiler_params=pltpu.CompilerParams(
            dimension_semantics=("parallel",),
            vmem_limit_bytes=vmem_limit,
        ),
        cost_estimate=cost,
    )(params, xg)

    out_flat = out2d.reshape(rows_pad * _ROW_LANES)         # zero-copy
    if pad:
        out_flat = out_flat[:elems]
    return out_flat.reshape(n, 3)                           # zero-copy


def _reference(x_nchw, conv_w, conv_b, fc_w, fc_b):
    # Pure-JAX reference mirroring the PyTorch forward (no matmuls -> exact-ish).
    n = x_nchw.shape[0]
    x2 = x_nchw.reshape(n, 3).astype(jnp.float32)
    w = conv_w.reshape(3)
    h = jnp.maximum(x2[:, 0] * w[0] + x2[:, 1] * w[1] + x2[:, 2] * w[2] + conv_b[0], 0.0)
    return h[:, None] * fc_w.reshape(3)[None, :] + fc_b.reshape(3)[None, :]


if __name__ == "__main__":
    key = jax.random.PRNGKey(0)
    k_x, k_xb, k_cw, k_cb, k_fw, k_fb = jax.random.split(key, 6)

    # Deterministic parameters (same shapes as the PyTorch module).
    conv_w = jax.random.normal(k_cw, (1, 3, 1, 1), dtype=jnp.float32) * 0.5
    conv_b = jax.random.normal(k_cb, (1,), dtype=jnp.float32) * 0.1
    fc_w = jax.random.normal(k_fw, (3, 1), dtype=jnp.float32) * 0.5
    fc_b = jax.random.normal(k_fb, (3,), dtype=jnp.float32) * 0.1

    # Case 1: tiny batch, Pallas path forced -> exercises the ragged/padded tail.
    x_small = jax.random.normal(k_x, (8, 3, 1, 1), dtype=jnp.float32)
    out_small = neural_network_1_1(x_small, conv_w, conv_b, fc_w, fc_b,
                                   min_pallas_batch=0)
    out_small = jax.block_until_ready(out_small)
    ref_small = _reference(x_small, conv_w, conv_b, fc_w, fc_b)
    assert out_small.shape == (8, 3)
    assert jnp.allclose(out_small, ref_small, atol=1e-5, rtol=1e-5)

    # Case 1b: same tiny batch through the default jnp fast path.
    out_fast = jax.block_until_ready(
        neural_network_1_1(x_small, conv_w, conv_b, fc_w, fc_b))
    assert jnp.allclose(out_fast, ref_small, atol=1e-5, rtol=1e-5)

    # Case 2: batch large enough for the Pallas path with a 2-step grid and zero
    # padding (3*8192 is a multiple of 384).
    x_big = jax.random.normal(k_xb, (8192, 3, 1, 1), dtype=jnp.float32)
    out_big = jax.block_until_ready(
        neural_network_1_1(x_big, conv_w, conv_b, fc_w, fc_b))
    ref_big = _reference(x_big, conv_w, conv_b, fc_w, fc_b)
    assert out_big.shape == (8192, 3)
    assert jnp.allclose(out_big, ref_big, atol=1e-5, rtol=1e-5)

    print("KERNEL_OK")
</pallas_src>

<mosaic_0001>
module attributes {stable_mosaic.version = 11 : i64} {
  func.func @_nn11_kernel(%arg0: i32, %arg1: memref<10xf32, #tpu.memory_space<smem>>, %arg2: memref<8x384xf32, #tpu.memory_space<vmem>>, %arg3: memref<8x384xf32, #tpu.memory_space<vmem>>) attributes {dimension_semantics = [#tpu.dimension_semantics<parallel>], iteration_bounds = array<i64: 1>, scalar_prefetch = 0 : i64, scratch_operands = 0 : i64, tpu.core_type = #tpu.core_type<tc>, window_params = [{transform_indices = @transform_0, window_bounds = array<i64: 10>}, {transform_indices = @transform_1, window_bounds = array<i64: 8, 384>}, {transform_indices = @transform_2, window_bounds = array<i64: 8, 384>}]} {
    %c0 = arith.constant 0 : index
    %c0_0 = arith.constant 0 : index
    %0 = vector.load %arg2[%c0, %c0_0] : memref<8x384xf32, #tpu.memory_space<vmem>>, vector<8x384xf32>
    %1 = tpu.iota {dimensions = array<i32: 1>} : vector<1x384xi32>
    %c3_i32 = arith.constant 3 : i32
    %c0_i32 = arith.constant 0 : i32
    %2 = arith.cmpi eq, %c3_i32, %c0_i32 : i32
    %c1_i32 = arith.constant 1 : i32
    %3 = arith.select %2, %c1_i32, %c3_i32 : i32
    %4 = vector.broadcast %3 : i32 to vector<1x384xi32>
    %5 = arith.remsi %1, %4 : vector<1x384xi32>
    %c0_i32_1 = arith.constant 0 : i32
    %6 = vector.broadcast %c0_i32_1 : i32 to vector<1x384xi32>
    %7 = arith.cmpi ne, %5, %6 : vector<1x384xi32>
    %c0_i32_2 = arith.constant 0 : i32
    %8 = vector.broadcast %c0_i32_2 : i32 to vector<1x384xi32>
    %9 = arith.cmpi slt, %5, %8 : vector<1x384xi32>
    %c0_i32_3 = arith.constant 0 : i32
    %10 = arith.cmpi slt, %3, %c0_i32_3 : i32
    %11 = vector.broadcast %10 : i1 to vector<1x384xi1>
    %12 = vector.broadcast %11 : vector<1x384xi1> to vector<1x384xi1>
    %13 = arith.xori %9, %12 : vector<1x384xi1>
    %14 = arith.andi %13, %7 : vector<1x384xi1>
    %15 = vector.broadcast %3 : i32 to vector<1x384xi32>
    %16 = arith.addi %5, %15 : vector<1x384xi32>
    %17 = arith.select %14, %16, %5 : vector<1x384xi1>, vector<1x384xi32>
    %c0_i32_4 = arith.constant 0 : i32
    %18 = vector.broadcast %c0_i32_4 : i32 to vector<1x384xi32>
    %19 = arith.cmpi eq, %17, %18 : vector<1x384xi32>
    %c0_5 = arith.constant 0 : index
    %20 = memref.load %arg1[%c0_5] : memref<10xf32, #tpu.memory_space<smem>>
    %c1_i32_6 = arith.constant 1 : i32
    %21 = vector.broadcast %c1_i32_6 : i32 to vector<1x384xi32>
    %22 = arith.cmpi eq, %17, %21 : vector<1x384xi32>
    %c1 = arith.constant 1 : index
    %23 = memref.load %arg1[%c1] : memref<10xf32, #tpu.memory_space<smem>>
    %c2 = arith.constant 2 : index
    %24 = memref.load %arg1[%c2] : memref<10xf32, #tpu.memory_space<smem>>
    %25 = vector.broadcast %23 : f32 to vector<1x384xf32>
    %26 = vector.broadcast %24 : f32 to vector<1x384xf32>
    %27 = arith.select %22, %25, %26 : vector<1x384xi1>, vector<1x384xf32>
    %28 = vector.broadcast %20 : f32 to vector<1x384xf32>
    %29 = arith.select %19, %28, %27 : vector<1x384xi1>, vector<1x384xf32>
    %c0_i32_7 = arith.constant 0 : i32
    %30 = vector.broadcast %c0_i32_7 : i32 to vector<1x384xi32>
    %31 = arith.cmpi eq, %17, %30 : vector<1x384xi32>
    %c4 = arith.constant 4 : index
    %32 = memref.load %arg1[%c4] : memref<10xf32, #tpu.memory_space<smem>>
    %c1_i32_8 = arith.constant 1 : i32
    %33 = vector.broadcast %c1_i32_8 : i32 to vector<1x384xi32>
    %34 = arith.cmpi eq, %17, %33 : vector<1x384xi32>
    %c5 = arith.constant 5 : index
    %35 = memref.load %arg1[%c5] : memref<10xf32, #tpu.memory_space<smem>>
    %c6 = arith.constant 6 : index
    %36 = memref.load %arg1[%c6] : memref<10xf32, #tpu.memory_space<smem>>
    %37 = vector.broadcast %35 : f32 to vector<1x384xf32>
    %38 = vector.broadcast %36 : f32 to vector<1x384xf32>
    %39 = arith.select %34, %37, %38 : vector<1x384xi1>, vector<1x384xf32>
    %40 = vector.broadcast %32 : f32 to vector<1x384xf32>
    %41 = arith.select %31, %40, %39 : vector<1x384xi1>, vector<1x384xf32>
    %c0_i32_9 = arith.constant 0 : i32
    %42 = vector.broadcast %c0_i32_9 : i32 to vector<1x384xi32>
    %43 = arith.cmpi eq, %17, %42 : vector<1x384xi32>
    %c7 = arith.constant 7 : index
    %44 = memref.load %arg1[%c7] : memref<10xf32, #tpu.memory_space<smem>>
    %c1_i32_10 = arith.constant 1 : i32
    %45 = vector.broadcast %c1_i32_10 : i32 to vector<1x384xi32>
    %46 = arith.cmpi eq, %17, %45 : vector<1x384xi32>
    %c8 = arith.constant 8 : index
    %47 = memref.load %arg1[%c8] : memref<10xf32, #tpu.memory_space<smem>>
    %c9 = arith.constant 9 : index
    %48 = memref.load %arg1[%c9] : memref<10xf32, #tpu.memory_space<smem>>
    %49 = vector.broadcast %47 : f32 to vector<1x384xf32>
    %50 = vector.broadcast %48 : f32 to vector<1x384xf32>
    %51 = arith.select %46, %49, %50 : vector<1x384xi1>, vector<1x384xf32>
    %52 = vector.broadcast %44 : f32 to vector<1x384xf32>
    %53 = arith.select %43, %52, %51 : vector<1x384xi1>, vector<1x384xf32>
    %c3 = arith.constant 3 : index
    %54 = memref.load %arg1[%c3] : memref<10xf32, #tpu.memory_space<smem>>
    %55 = vector.broadcast %29 : vector<1x384xf32> to vector<8x384xf32>
    %56 = arith.mulf %0, %55 : vector<8x384xf32>
    %c1_i32_11 = arith.constant 1 : i32
    %57 = tpu.dynamic_rotate %56 by %c1_i32_11 dim 1 : vector<8x384xf32>, i32 -> vector<8x384xf32>
    %58 = arith.addf %56, %57 : vector<8x384xf32>
    %c383_i32 = arith.constant 383 : i32
    %59 = tpu.dynamic_rotate %56 by %c383_i32 dim 1 : vector<8x384xf32>, i32 -> vector<8x384xf32>
    %60 = arith.addf %58, %59 : vector<8x384xf32>
    %61 = vector.broadcast %54 : f32 to vector<8x384xf32>
    %62 = arith.addf %60, %61 : vector<8x384xf32>
    %cst = arith.constant 0.000000e+00 : f32
    %63 = vector.broadcast %cst : f32 to vector<8x384xf32>
    %64 = arith.maximumf %62, %63 : vector<8x384xf32>
    %c1_i32_12 = arith.constant 1 : i32
    %65 = vector.broadcast %c1_i32_12 : i32 to vector<1x384xi32>
    %66 = arith.cmpi eq, %17, %65 : vector<1x384xi32>
    %cst_13 = arith.constant 0.000000e+00 : f32
    %67 = vector.shape_cast %66 : vector<1x384xi1> to vector<1x384xi1>
    %68 = vector.broadcast %67 : vector<1x384xi1> to vector<8x384xi1>
    %69 = vector.broadcast %cst_13 : f32 to vector<8x384xf32>
    %70 = arith.select %68, %64, %69 : vector<8x384xi1>, vector<8x384xf32>
    %c1_i32_14 = arith.constant 1 : i32
    %71 = tpu.dynamic_rotate %70 by %c1_i32_14 dim 1 : vector<8x384xf32>, i32 -> vector<8x384xf32>
    %72 = arith.addf %70, %71 : vector<8x384xf32>
    %c383_i32_15 = arith.constant 383 : i32
    %73 = tpu.dynamic_rotate %70 by %c383_i32_15 dim 1 : vector<8x384xf32>, i32 -> vector<8x384xf32>
    %74 = arith.addf %72, %73 : vector<8x384xf32>
    %75 = vector.broadcast %41 : vector<1x384xf32> to vector<8x384xf32>
    %76 = arith.mulf %74, %75 : vector<8x384xf32>
    %77 = vector.broadcast %53 : vector<1x384xf32> to vector<8x384xf32>
    %78 = arith.addf %76, %77 : vector<8x384xf32>
    %c0_16 = arith.constant 0 : index
    %c0_17 = arith.constant 0 : index
    %79 = vector.load %arg3[%c0_16, %c0_17] : memref<8x384xf32, #tpu.memory_space<vmem>>, vector<8x384xf32>
    tpu.vector_store %arg3[%c0_16, %c0_17], %78 {strides = array<i32>} : memref<8x384xf32, #tpu.memory_space<vmem>>, vector<8x384xf32>,
    return
  }
  func.func @transform_0(%arg0: i32) -> i32 {
    %c0_i32 = arith.constant 0 : i32
    %c0_i32_0 = arith.constant 0 : i32
    return %c0_i32 : i32
  }
  func.func @transform_1(%arg0: i32) -> (i32, i32) {
    %c0_i32 = arith.constant 0 : i32
    %c0_i32_0 = arith.constant 0 : i32
    return %arg0, %c0_i32 : i32, i32
  }
  func.func @transform_2(%arg0: i32) -> (i32, i32) {
    %c0_i32 = arith.constant 0 : i32
    %c0_i32_0 = arith.constant 0 : i32
    return %arg0, %c0_i32 : i32, i32
  }
}

</mosaic_0001>

<llo_original>
// kernel: tpu_custom_call.1
$region0: #{tpu_custom_call.1}
  #allocation0 [shape = 'u32[]', space=smem, size = 0x4, offset = 0x4, fixed_abs, tag = 'smem constant byte address 0x4 - core index']
  #allocation1 [shape = 'u32[144,128]{1,0:T(1,128)}', space=vmem, size = 0x12000, scoped, tag = 'internal scratch']
  %s0 = inlined_call_operand.hbm [shape: f32[10], index: 0, kind: input, shape index: {}]
  %s1 = inlined_call_operand.hbm [shape: f32[8,384], index: 1, kind: input, shape index: {}]
  %s2 = inlined_call_operand.hbm [shape: f32[8,384], index: 2, kind: output, shape index: {}]
  %s3 = sld [smem:[#allocation0]]
  $region26: #{tpu_custom_call.1} parent=0
    _
  %s5 = ssub.s32 1, %s3
  %s6 = scalar_select 0, %s5, %s3
  $region1: #{tpu_custom_call.1} parent=0
    #allocation2 [shape = 'u8[512]{0}', space=smem, size = 0x200, scoped, tag = 'input window, operand 0, single buffered']
    #allocation3 [shape = 's32[1]{0}', space=sflag, size = 0x4, scoped, tag = 'scoped memory for tpu_custom_call.1']
    #allocation4 [shape = 's32[1]{0}', space=sflag, size = 0x4, scoped, tag = 'scoped memory for tpu_custom_call.1']
    #allocation5 [shape = 's32[1]{0}', space=sflag, size = 0x4, scoped, tag = 'scoped memory for tpu_custom_call.1']
    #allocation6 [shape = 'u8[12288]{0}', space=vmem, size = 0x3000, scoped, tag = 'input window, operand 1, single buffered']
    #allocation7 [shape = 'u8[12288]{0}', space=vmem, size = 0x3000, scoped, tag = 'output window, operand 0, single buffered']
    %7 = vsyncpa [#allocation5], 0
    %8 = vsyncpa [#allocation3], 0
    %9 = vsyncpa [#allocation4], 0
    // Predicated region
    $region2: #{tpu_custom_call.1} parent=1 // pred_check
      _
    $region3: #{tpu_custom_call.1} parent=1 // pred_check_branch
      %11 = sbr.rel (0) target = $region5
    $region4: #{tpu_custom_call.1} parent=1 // pred_region
      %s13 = ssub.s32 16, 16
      %14 = vsyncadd [#allocation5], %s13
      %17 = dma.hbm_to_smem %s0, 16, [#allocation2], [#allocation5]
    $region5: #{tpu_custom_call.1} parent=1 // pred_fallthru
      _
    // Predicated region
    $region6: #{tpu_custom_call.1} parent=1 // pred_check
      _
    $region7: #{tpu_custom_call.1} parent=1 // pred_check_branch
      %19 = sbr.rel (0) target = $region9
    $region8: #{tpu_custom_call.1} parent=1 // pred_region
      %s21 = ssub.s32 384, 384
      %22 = vsyncadd [#allocation3], %s21
      %s24 = sshll.u32 [#allocation6], 4
      %s25 = int_to_ptr.vmem [resolvable:$true] %s24
      %27 = dma.hbm_to_vmem [thread:$0]  %s1, 384, %s25, [#allocation3]
    $region9: #{tpu_custom_call.1} parent=1 // pred_fallthru
      _
    // Predicated region
    $region10: #{tpu_custom_call.1} parent=1 // pred_check
      _
    $region11: #{tpu_custom_call.1} parent=1 // pred_check_branch
      %29 = sbr.rel (0) target = $region13
    $region12: #{tpu_custom_call.1} parent=1 // pred_region
      %30 = dma.done [#allocation5], 16
    $region13: #{tpu_custom_call.1} parent=1 // pred_fallthru
      _
    // Predicated region
    $region14: #{tpu_custom_call.1} parent=1 // pred_check
      _
    $region15: #{tpu_custom_call.1} parent=1 // pred_check_branch
      %32 = sbr.rel (0) target = $region17
    $region16: #{tpu_custom_call.1} parent=1 // pred_region
      %33 = dma.done [#allocation3], 384
    $region17: #{tpu_custom_call.1} parent=1 // pred_fallthru
      _
    %34 = sfence
    %v35 = vld [vmem:[#allocation6] sm:$0xff]
    %v36 = vld [vmem:[#allocation6 + $0x8] sm:$0xff]
    %v37 = vld [vmem:[#allocation6 + $0x10] sm:$0xff]
    %v38 = vlaneseq
    %v39 = vand.u32 %v38, 127
    %v40 = vadd.s32 %v39, 128
    %v41 = vadd.s32 %v39, 256
    %vm42 = vcmp.lt.s32.totalorder %v39, 0
    %v43 = vsub.s32 0, %v39
    %v44 = vsel %vm42, %v43, %v39
    %v45 = vmul.u32.u64.compose %v44, 2863311531
    %v46 = vextract.low.u32 %v45
    %v47 = vextract.high.u32 %v45
    %v48 = vshrl.u32 %v47, 1
    %v49 = vmul.u32 %v48, 3
    %v50 = vsub.s32 %v44, %v49
    %v51 = vsub.s32 0, %v50
    %v52 = vsel %vm42, %v51, %v50
    %vm53 = vcmp.lt.s32.totalorder %v40, 0
    %v54 = vsub.s32 0, %v40
    %v55 = vsel %vm53, %v54, %v40
    %v56 = vmul.u32.u64.compose %v55, 2863311531
    %v57 = vextract.low.u32 %v56
    %v58 = vextract.high.u32 %v56
    %v59 = vshrl.u32 %v58, 1
    %v60 = vmul.u32 %v59, 3
    %v61 = vsub.s32 %v55, %v60
    %v62 = vsub.s32 0, %v61
    %v63 = vsel %vm53, %v62, %v61
    %vm64 = vcmp.lt.s32.totalorder %v41, 0
    %v65 = vsub.s32 0, %v41
    %v66 = vsel %vm64, %v65, %v41
    %v67 = vmul.u32.u64.compose %v66, 2863311531
    %v68 = vextract.low.u32 %v67
    %v69 = vextract.high.u32 %v67
    %v70 = vshrl.u32 %v69, 1
    %v71 = vmul.u32 %v70, 3
    %v72 = vsub.s32 %v66, %v71
    %v73 = vsub.s32 0, %v72
    %v74 = vsel %vm64, %v73, %v72
    %vm75 = vcmp.ne.s32.totalorder %v52, 0
    %vm76 = vcmp.ne.s32.totalorder %v63, 0
    %vm77 = vcmp.ne.s32.totalorder %v74, 0
    %vm78 = vcmp.lt.s32.totalorder %v52, 0
    %vm79 = vcmp.lt.s32.totalorder %v63, 0
    %vm80 = vcmp.lt.s32.totalorder %v74, 0
    %vm81 = vmand %vm78, %vm75
    %vm82 = vmand %vm79, %vm76
    %vm83 = vmand %vm80, %vm77
    %v84 = vadd.s32 %v52, 3
    %v85 = vadd.s32 %v63, 3
    %v86 = vadd.s32 %v74, 3
    %v87 = vsel %vm81, %v84, %v52
    %v88 = vsel %vm82, %v85, %v63
    %v89 = vsel %vm83, %v86, %v74
    %vm90 = vcmp.eq.s32.totalorder %v87, 0
    %vm91 = vcmp.eq.s32.totalorder %v88, 0
    %vm92 = vcmp.eq.s32.totalorder %v89, 0
    %s93 = sld [smem:[#allocation2]]
    %vm94 = vcmp.eq.s32.totalorder %v87, 1
    %vm95 = vcmp.eq.s32.totalorder %v88, 1
    %vm96 = vcmp.eq.s32.totalorder %v89, 1
    %s97 = sld [smem:[#allocation2 + $0x1]]
    %s98 = sld [smem:[#allocation2 + $0x2]]
    %v99 = vstv %s97
    %v100 = vstv %s98
    %v101 = vsel %vm94, %v99, %v100
    %v102 = vsel %vm95, %v99, %v100
    %v103 = vsel %vm96, %v99, %v100
    %v104 = vstv %s93
    %v105 = vsel %vm90, %v104, %v101
    %v106 = vsel %vm91, %v104, %v102
    %v107 = vsel %vm92, %v104, %v103
    %s108 = sld [smem:[#allocation2 + $0x4]]
    %s109 = sld [smem:[#allocation2 + $0x5]]
    %s110 = sld [smem:[#allocation2 + $0x6]]
    %v111 = vstv %s109
    %v112 = vstv %s110
    %v113 = vsel %vm94, %v111, %v112
    %v114 = vsel %vm95, %v111, %v112
    %v115 = vsel %vm96, %v111, %v112
    %v116 = vstv %s108
    %v117 = vsel %vm90, %v116, %v113
    %v118 = vsel %vm91, %v116, %v114
    %v119 = vsel %vm92, %v116, %v115
    %s120 = sld [smem:[#allocation2 + $0x7]]
    %s121 = sld [smem:[#allocation2 + $0x8]]
    %s122 = sld [smem:[#allocation2 + $0x9]]
    %v123 = vstv %s121
    %v124 = vstv %s122
    %v125 = vsel %vm94, %v123, %v124
    %v126 = vsel %vm95, %v123, %v124
    %v127 = vsel %vm96, %v123, %v124
    %v128 = vstv %s120
    %v129 = vsel %vm90, %v128, %v125
    %v130 = vsel %vm91, %v128, %v126
    %v131 = vsel %vm92, %v128, %v127
    %s132 = sld [smem:[#allocation2 + $0x3]]
    %v133 = vmul.f32 %v35, %v105
    %v134 = vmul.f32 %v36, %v106
    %v135 = vmul.f32 %v37, %v107
    %136 = vrot.lane.b32.xlu0 %v133, 1
    %v137 = vpop.permute.xlu0 %136
    %138 = vrot.lane.b32.xlu0 %v134, 1
    %v139 = vpop.permute.xlu0 %138
    %140 = vrot.lane.b32.xlu0 %v135, 1
    %v141 = vpop.permute.xlu0 %140
    %vm142 = vcmp.lt.s32.totalorder %v39, 1
    %v143 = vsel %vm142, %v139, %v141
    %v144 = vsel %vm142, %v137, %v139
    %v145 = vsel %vm142, %v141, %v137
    %v146 = vadd.f32 %v133, %v145
    %v147 = vadd.f32 %v134, %v144
    %v148 = vadd.f32 %v135, %v143
    %149 = vrot.lane.b32.xlu0 %v133, 127
    %v150 = vpop.permute.xlu0 %149
    %151 = vrot.lane.b32.xlu0 %v134, 127
    %v152 = vpop.permute.xlu0 %151
    %153 = vrot.lane.b32.xlu0 %v135, 127
    %v154 = vpop.permute.xlu0 %153
    %vm155 = vcmp.lt.s32.totalorder %v39, 127
    %v156 = vsel %vm155, %v152, %v154
    %v157 = vsel %vm155, %v150, %v152
    %v158 = vsel %vm155, %v154, %v150
    %v159 = vadd.f32 %v146, %v157
    %v160 = vadd.f32 %v147, %v156
    %v161 = vadd.f32 %v148, %v158
    %v162 = vstv %s132
    %v163 = vadd.f32 %v159, %v162
    %v164 = vadd.f32 %v160, %v162
    %v165 = vadd.f32 %v161, %v162
    %v166 = vmax.f32 %v163, 0.0
    %v167 = vmax.f32 %v164, 0.0
    %v168 = vmax.f32 %v165, 0.0
    %v169 = vsel %vm94, 1, 0
    %v170 = vsel %vm95, 1, 0
    %v171 = vsel %vm96, 1, 0
    %vm172 = vcmp.eq.s32.totalorder %v169, 1
    %vm173 = vcmp.eq.s32.totalorder %v170, 1
    %vm174 = vcmp.eq.s32.totalorder %v171, 1
    %v175 = vsel %vm172, %v166, 0.0
    %v176 = vsel %vm173, %v167, 0.0
    %v177 = vsel %vm174, %v168, 0.0
    %178 = vrot.lane.b32.xlu0 %v175, 1
    %v179 = vpop.permute.xlu0 %178
    %180 = vrot.lane.b32.xlu0 %v176, 1
    %v181 = vpop.permute.xlu0 %180
    %182 = vrot.lane.b32.xlu0 %v177, 1
    %v183 = vpop.permute.xlu0 %182
    %v184 = vsel %vm142, %v181, %v183
    %v185 = vsel %vm142, %v179, %v181
    %v186 = vsel %vm142, %v183, %v179
    %v187 = vadd.f32 %v175, %v186
    %v188 = vadd.f32 %v176, %v185
    %v189 = vadd.f32 %v177, %v184
    %190 = vrot.lane.b32.xlu0 %v175, 127
    %v191 = vpop.permute.xlu0 %190
    %192 = vrot.lane.b32.xlu0 %v176, 127
    %v193 = vpop.permute.xlu0 %192
    %194 = vrot.lane.b32.xlu0 %v177, 127
    %v195 = vpop.permute.xlu0 %194
    %v196 = vsel %vm155, %v193, %v195
    %v197 = vsel %vm155, %v191, %v193
    %v198 = vsel %vm155, %v195, %v191
    %v199 = vadd.f32 %v187, %v197
    %v200 = vadd.f32 %v188, %v196
    %v201 = vadd.f32 %v189, %v198
    %v202 = vmul.f32 %v199, %v117
    %v203 = vmul.f32 %v200, %v118
    %v204 = vmul.f32 %v201, %v119
    %v205 = vadd.f32 %v202, %v129
    %v206 = vadd.f32 %v203, %v130
    %v207 = vadd.f32 %v204, %v131
    %208 = vst [vmem:[#allocation7] sm:$0xff] %v205
    %209 = vst [vmem:[#allocation7 + $0x8] sm:$0xff] %v206
    %210 = vst [vmem:[#allocation7 + $0x10] sm:$0xff] %v207
    // Predicated region
    $region18: #{tpu_custom_call.1} parent=1 // pred_check
      _
    $region19: #{tpu_custom_call.1} parent=1 // pred_check_branch
      %212 = sbr.rel (0) target = $region21
    $region20: #{tpu_custom_call.1} parent=1 // pred_region
      %s214 = ssub.s32 384, 384
      %215 = vsyncadd [#allocation4], %s214
      %s217 = sshll.u32 [#allocation7], 4
      %s218 = int_to_ptr.vmem [resolvable:$true] %s217
      %220 = dma.vmem_to_hbm [thread:$0]  %s218, 384, %s2, [#allocation4]
    $region21: #{tpu_custom_call.1} parent=1 // pred_fallthru
      _
    // Predicated region
    $region22: #{tpu_custom_call.1} parent=1 // pred_check
      _
    $region23: #{tpu_custom_call.1} parent=1 // pred_check_branch
      %222 = sbr.rel (0) target = $region25
    $region24: #{tpu_custom_call.1} parent=1 // pred_region
      %223 = dma.done [#allocation4], 384
    $region25: #{tpu_custom_call.1} parent=1 // pred_fallthru
      _
    %224 = vsyncpa [#allocation3], 1
    %225 = vsyncpa [#allocation4], 1
    %226 = vsyncpa [#allocation5], 1

</llo_original>
